<compile_context>
chip_gen: v7x
topology: tpu7x:2x2x1
jax: 0.10.0
libtpu: 0.0.40
codegen_flags: <defaults>
</compile_context>

<pallas_src>
import functools

import jax
import jax.numpy as jnp
from jax.experimental import pallas as pl
from jax.experimental.pallas import tpu as pltpu


# ----------------------------------------------------------------------------
# Fused FCNet kernel:  acc += x_tile @ w_tile ; on last k-step:
#   y = acc * weight_norm_scale + bias ; y = activation(y) ; store
# ----------------------------------------------------------------------------
def _fcnet_kernel(x_ref, w_ref, b_ref, s_ref, o_ref, acc_ref, *, activate):
    k = pl.program_id(2)

    @pl.when(k == 0)
    def _():
        acc_ref[...] = jnp.zeros_like(acc_ref)

    acc_ref[...] += jnp.dot(
        x_ref[...], w_ref[...], preferred_element_type=jnp.float32
    )

    @pl.when(k == pl.num_programs(2) - 1)
    def _():
        y = acc_ref[...] * s_ref[0, 0] + b_ref[...]
        if activate == "relu":
            y = jnp.maximum(y, 0.0)
        elif activate == "sigmoid":
            y = jax.nn.sigmoid(y)
        elif activate == "tanh":
            y = jnp.tanh(y)
        o_ref[...] = y.astype(o_ref.dtype)


def _round_up(a, m):
    return (a + m - 1) // m * m


def fcnet_forward(x, params, activate=None, drop=0.0):
    """FCNet.forward: (optional dropout=identity at eval/drop=0) -> weight_norm Linear
    -> optional activation.  x: [..., in_size] -> [..., out_size]."""
    # TODO(synk): training-mode stochastic dropout (drop_value > 0) not implemented;
    # this is the eval / drop=0 path (identity), matching the module default.
    del drop

    v, g, b = params                       # v: [Din, Dout], g: scalar, b: [Dout]
    orig_shape = x.shape
    K = orig_shape[-1]
    N = v.shape[1]
    x2 = x.reshape(-1, K)
    M = x2.shape[0]

    # weight_norm(dim=None) scale, applied to the accumulator at finalize.
    scale = (g / jnp.sqrt(jnp.sum(v * v))).reshape(1, 1).astype(jnp.float32)

    # Tile sizes: lane-dense (multiples of 128 on the minor dims), multiples of 8 on M,
    # capped so the double-buffered footprint fits comfortably in v7x's 64 MiB VMEM.
    tm = min(256, _round_up(M, 8))
    tn = min(256, _round_up(N, 128))
    tk = min(512, _round_up(K, 128))
    Mp, Kp, Np = _round_up(M, tm), _round_up(K, tk), _round_up(N, tn)

    xp = x2 if (Mp == M and Kp == K) else jnp.pad(x2, ((0, Mp - M), (0, Kp - K)))
    wp = v if (Kp == K and Np == N) else jnp.pad(v, ((0, Kp - K), (0, Np - N)))
    b2 = b.reshape(1, N)
    bp = b2 if Np == N else jnp.pad(b2, ((0, 0), (0, Np - N)))

    grid = (Mp // tm, Np // tn, Kp // tk)

    out = pl.pallas_call(
        functools.partial(_fcnet_kernel, activate=activate),
        out_shape=jax.ShapeDtypeStruct((Mp, Np), x.dtype),
        grid=grid,
        in_specs=[
            pl.BlockSpec((tm, tk), lambda i, j, k: (i, k)),      # x tile
            pl.BlockSpec((tk, tn), lambda i, j, k: (k, j)),      # weight tile
            pl.BlockSpec((1, tn), lambda i, j, k: (0, j)),       # bias tile
            pl.BlockSpec(memory_space=pltpu.MemorySpace.SMEM),   # weight_norm scale
        ],
        out_specs=pl.BlockSpec((tm, tn), lambda i, j, k: (i, j)),
        scratch_shapes=[pltpu.VMEM((tm, tn), jnp.float32)],
        compiler_params=pltpu.CompilerParams(
            dimension_semantics=("parallel", "parallel", "arbitrary"),
            vmem_limit_bytes=32 * 1024 * 1024,
        ),
    )(xp, wp, bp, scale)

    out = out[:M, :N]
    return out.reshape(orig_shape[:-1] + (N,))


# ----------------------------------------------------------------------------
# Pure-JAX reference (for correctness check)
# ----------------------------------------------------------------------------
def fcnet_ref(x, params, activate=None):
    v, g, b = params
    w = v * (g / jnp.sqrt(jnp.sum(v * v)))
    y = x @ w + b
    if activate == "relu":
        y = jnp.maximum(y, 0.0)
    elif activate == "sigmoid":
        y = jax.nn.sigmoid(y)
    elif activate == "tanh":
        y = jnp.tanh(y)
    return y


if __name__ == "__main__":
    key = jax.random.PRNGKey(0)
    B, S, Din, Dout = 2, 8, 32, 32

    kx, kv, kb = jax.random.split(key, 3)
    x = jax.random.normal(kx, (B, S, Din), jnp.float32)
    v = 0.1 * jax.random.normal(kv, (Din, Dout), jnp.float32)
    b = 0.1 * jax.random.normal(kb, (Dout,), jnp.float32)
    # weight_norm gain; non-trivial (!= ||v||) so the fused scale path is exercised.
    g = jnp.float32(0.7) * jnp.sqrt(jnp.sum(v * v))
    params = (v, g, b)

    y_none = fcnet_forward(x, params, activate=None)
    y_relu = fcnet_forward(x, params, activate="relu")
    jax.block_until_ready((y_none, y_relu))

    r_none = fcnet_ref(x, params, None)
    r_relu = fcnet_ref(x, params, "relu")

    assert y_none.shape == (B, S, Dout)
    assert y_relu.shape == (B, S, Dout)
    assert jnp.allclose(y_none, r_none, atol=1e-5, rtol=1e-5)
    assert jnp.allclose(y_relu, r_relu, atol=1e-5, rtol=1e-5)
    print("KERNEL_OK")
</pallas_src>

<mosaic_0001>
module attributes {stable_mosaic.version = 11 : i64} {
  func.func @_fcnet_kernel(%arg0: i32, %arg1: i32, %arg2: i32, %arg3: memref<16x128xf32, #tpu.memory_space<vmem>>, %arg4: memref<128x128xf32, #tpu.memory_space<vmem>>, %arg5: memref<1x128xf32, #tpu.memory_space<vmem>>, %arg6: memref<1x1xf32, #tpu.memory_space<smem>>, %arg7: memref<16x128xf32, #tpu.memory_space<vmem>>, %arg8: memref<16x128xf32, #tpu.memory_space<vmem>>) attributes {dimension_semantics = [#tpu.dimension_semantics<parallel>, #tpu.dimension_semantics<parallel>, #tpu.dimension_semantics<arbitrary>], iteration_bounds = array<i64: 1, 1, 1>, scalar_prefetch = 0 : i64, scratch_operands = 1 : i64, tpu.core_type = #tpu.core_type<tc>, window_params = [{transform_indices = @transform_0, window_bounds = array<i64: 16, 128>}, {transform_indices = @transform_1, window_bounds = array<i64: 128, 128>}, {transform_indices = @transform_2, window_bounds = array<i64: 1, 128>}, {transform_indices = @transform_3, window_bounds = array<i64: 1, 1>}, {transform_indices = @transform_4, window_bounds = array<i64: 16, 128>}]} {
    %c0_i32 = arith.constant 0 : i32
    %0 = arith.cmpi eq, %arg2, %c0_i32 : i32
    %1 = arith.extui %0 : i1 to i32
    %c0_i32_0 = arith.constant 0 : i32
    %2 = arith.cmpi ne, %1, %c0_i32_0 : i32
    scf.if %2 {
      %cst_10 = arith.constant 0.000000e+00 : f32
      %12 = vector.broadcast %cst_10 : f32 to vector<16x128xf32>
      %c0_11 = arith.constant 0 : index
      %c0_12 = arith.constant 0 : index
      %13 = vector.load %arg8[%c0_11, %c0_12] : memref<16x128xf32, #tpu.memory_space<vmem>>, vector<16x128xf32>
      tpu.vector_store %arg8[%c0_11, %c0_12], %12 {strides = array<i32>} : memref<16x128xf32, #tpu.memory_space<vmem>>, vector<16x128xf32>,
    } else {
    }
    %c0 = arith.constant 0 : index
    %c0_1 = arith.constant 0 : index
    %3 = vector.load %arg8[%c0, %c0_1] : memref<16x128xf32, #tpu.memory_space<vmem>>, vector<16x128xf32>
    %c0_2 = arith.constant 0 : index
    %c0_3 = arith.constant 0 : index
    %4 = vector.load %arg3[%c0_2, %c0_3] : memref<16x128xf32, #tpu.memory_space<vmem>>, vector<16x128xf32>
    %c0_4 = arith.constant 0 : index
    %c0_5 = arith.constant 0 : index
    %5 = vector.load %arg4[%c0_4, %c0_5] : memref<128x128xf32, #tpu.memory_space<vmem>>, vector<128x128xf32>
    %cst = arith.constant dense<0.000000e+00> : vector<16x128xf32>
    %6 = tpu.matmul %4, %5, %cst {dimension_numbers = #tpu.dot_dimension_numbers<[1], [0], [0], [1], [0, 0, 1, 1], [], []>} : vector<16x128xf32>, vector<128x128xf32>, vector<16x128xf32> -> vector<16x128xf32>
    %7 = arith.addf %3, %6 : vector<16x128xf32>
    %c0_6 = arith.constant 0 : index
    %c0_7 = arith.constant 0 : index
    %8 = vector.load %arg8[%c0_6, %c0_7] : memref<16x128xf32, #tpu.memory_space<vmem>>, vector<16x128xf32>
    tpu.vector_store %arg8[%c0_6, %c0_7], %7 {strides = array<i32>} : memref<16x128xf32, #tpu.memory_space<vmem>>, vector<16x128xf32>,
    %c0_i32_8 = arith.constant 0 : i32
    %9 = arith.cmpi eq, %arg2, %c0_i32_8 : i32
    %10 = arith.extui %9 : i1 to i32
    %c0_i32_9 = arith.constant 0 : i32
    %11 = arith.cmpi ne, %10, %c0_i32_9 : i32
    scf.if %11 {
      %c0_10 = arith.constant 0 : index
      %c0_11 = arith.constant 0 : index
      %12 = vector.load %arg8[%c0_10, %c0_11] : memref<16x128xf32, #tpu.memory_space<vmem>>, vector<16x128xf32>
      %c0_12 = arith.constant 0 : index
      %c0_13 = arith.constant 0 : index
      %13 = memref.load %arg6[%c0_12, %c0_13] : memref<1x1xf32, #tpu.memory_space<smem>>
      %14 = vector.broadcast %13 : f32 to vector<16x128xf32>
      %15 = arith.mulf %12, %14 : vector<16x128xf32>
      %c0_14 = arith.constant 0 : index
      %c0_15 = arith.constant 0 : index
      %16 = vector.load %arg5[%c0_14, %c0_15] : memref<1x128xf32, #tpu.memory_space<vmem>>, vector<1x128xf32>
      %17 = vector.broadcast %16 : vector<1x128xf32> to vector<16x128xf32>
      %18 = arith.addf %15, %17 : vector<16x128xf32>
      %c0_16 = arith.constant 0 : index
      %c0_17 = arith.constant 0 : index
      %19 = vector.load %arg7[%c0_16, %c0_17] : memref<16x128xf32, #tpu.memory_space<vmem>>, vector<16x128xf32>
      tpu.vector_store %arg7[%c0_16, %c0_17], %18 {strides = array<i32>} : memref<16x128xf32, #tpu.memory_space<vmem>>, vector<16x128xf32>,
    } else {
    }
    return
  }
  func.func @transform_0(%arg0: i32, %arg1: i32, %arg2: i32) -> (i32, i32) {
    %c0_i32 = arith.constant 0 : i32
    return %arg0, %arg2 : i32, i32
  }
  func.func @transform_1(%arg0: i32, %arg1: i32, %arg2: i32) -> (i32, i32) {
    %c0_i32 = arith.constant 0 : i32
    return %arg2, %arg1 : i32, i32
  }
  func.func @transform_2(%arg0: i32, %arg1: i32, %arg2: i32) -> (i32, i32) {
    %c0_i32 = arith.constant 0 : i32
    %c0_i32_0 = arith.constant 0 : i32
    return %c0_i32, %arg1 : i32, i32
  }
  func.func @transform_3(%arg0: i32, %arg1: i32, %arg2: i32) -> (i32, i32) {
    %c0_i32 = arith.constant 0 : i32
    %c0_i32_0 = arith.constant 0 : i32
    %c0_i32_1 = arith.constant 0 : i32
    return %c0_i32, %c0_i32_0 : i32, i32
  }
  func.func @transform_4(%arg0: i32, %arg1: i32, %arg2: i32) -> (i32, i32) {
    %c0_i32 = arith.constant 0 : i32
    return %arg0, %arg1 : i32, i32
  }
}

</mosaic_0001>

<llo_original>
// kernel: tpu_custom_call.1
$region0: #{tpu_custom_call.1}
  #allocation0 [shape = 'u32[]', space=smem, size = 0x4, offset = 0x4, fixed_abs, tag = 'smem constant byte address 0x4 - core index']
  #allocation1 [shape = 'u32[144,128]{1,0:T(1,128)}', space=vmem, size = 0x12000, scoped, tag = 'internal scratch']
  #allocation2 [shape = 'f32[16,128]{1,0:T(8,128)}', space=vmem, size = 0x2000, scoped, tag = 'scratch operand']
  #allocation3 [shape = 'f32[1,1]{1,0:T(1,128)S(6)}', space=smem, size = 0x200, scoped, tag = 'scoped memory for tpu_custom_call.1']
  %s0 = inlined_call_operand.hbm [shape: f32[16,128], index: 0, kind: input, shape index: {}]
  %s1 = inlined_call_operand.hbm [shape: f32[128,128], index: 1, kind: input, shape index: {}]
  %s2 = inlined_call_operand.vmem [shape: f32[1,128], index: 2, kind: input, shape index: {}]
  %s3 = inlined_call_operand.<no memory space> [shape: f32[1,1], index: 3, kind: input, shape index: {}]
  %s4 = inlined_call_operand.hbm [shape: f32[16,128], index: 4, kind: output, shape index: {}]
  %s5 = sld [smem:[#allocation0]]
  $region42: #{tpu_custom_call.1} parent=0
    _
  %s7 = ssub.s32 1, %s5
  %s8 = scalar_select 0, %s7, %s5
  %9 = sst [smem:[#allocation3]] %s3
  $region1: #{tpu_custom_call.1} parent=0
    #allocation4 [shape = 'u8[8192]{0}', space=vmem, size = 0x2000, scoped, tag = 'input window, operand 0, single buffered']
    #allocation5 [shape = 's32[1]{0}', space=sflag, size = 0x4, scoped, tag = 'scoped memory for tpu_custom_call.1']
    #allocation6 [shape = 's32[1]{0}', space=sflag, size = 0x4, scoped, tag = 'scoped memory for tpu_custom_call.1']
    #allocation7 [shape = 'u8[65536]{0}', space=vmem, size = 0x10000, scoped, tag = 'input window, operand 1, single buffered']
    #allocation8 [shape = 's32[1]{0}', space=sflag, size = 0x4, scoped, tag = 'scoped memory for tpu_custom_call.1']
    #allocation9 [shape = 'u8[8192]{0}', space=vmem, size = 0x2000, scoped, tag = 'output window, operand 0, single buffered']
    %10 = vsyncpa [#allocation5], 0
    %11 = vsyncpa [#allocation8], 0
    %12 = vsyncpa [#allocation6], 0
    // Predicated region
    $region2: #{tpu_custom_call.1} parent=1 // pred_check
      _
    $region3: #{tpu_custom_call.1} parent=1 // pred_check_branch
      %14 = sbr.rel (0) target = $region5
    $region4: #{tpu_custom_call.1} parent=1 // pred_region
      %s16 = ssub.s32 256, 256
      %17 = vsyncadd [#allocation5], %s16
      %s18 = sshll.u32 [#allocation4], 4
      %s19 = int_to_ptr.vmem [resolvable:$true] %s18
      %24 = dma.hbm_to_vmem [thread:$0]  %s0, 256, %s19, [#allocation5], 128, 128, 8
    $region5: #{tpu_custom_call.1} parent=1 // pred_fallthru
      _
    // Predicated region
    $region6: #{tpu_custom_call.1} parent=1 // pred_check
      _
    $region7: #{tpu_custom_call.1} parent=1 // pred_check_branch
      %26 = sbr.rel (0) target = $region9
    $region8: #{tpu_custom_call.1} parent=1 // pred_region
      %s28 = ssub.s32 2048, 2048
      %29 = vsyncadd [#allocation8], %s28
      %s30 = sshll.u32 [#allocation7], 4
      %s31 = int_to_ptr.vmem [resolvable:$true] %s30
      %36 = dma.hbm_to_vmem [thread:$0]  %s1, 2048, %s31, [#allocation8], 128, 128, 8
    $region9: #{tpu_custom_call.1} parent=1 // pred_fallthru
      _
    // Predicated region
    $region10: #{tpu_custom_call.1} parent=1 // pred_check
      _
    $region11: #{tpu_custom_call.1} parent=1 // pred_check_branch
      %38 = sbr.rel (0) target = $region13
    $region12: #{tpu_custom_call.1} parent=1 // pred_region
      _
    $region13: #{tpu_custom_call.1} parent=1 // pred_fallthru
      _
    // Predicated region
    $region14: #{tpu_custom_call.1} parent=1 // pred_check
      _
    $region15: #{tpu_custom_call.1} parent=1 // pred_check_branch
      %40 = sbr.rel (0) target = $region17
    $region16: #{tpu_custom_call.1} parent=1 // pred_region
      _
    $region17: #{tpu_custom_call.1} parent=1 // pred_fallthru
      _
    // Predicated region
    $region18: #{tpu_custom_call.1} parent=1 // pred_check
      _
    $region19: #{tpu_custom_call.1} parent=1 // pred_check_branch
      %42 = sbr.rel (0) target = $region21
    $region20: #{tpu_custom_call.1} parent=1 // pred_region
      %43 = dma.done [#allocation5], 256
    $region21: #{tpu_custom_call.1} parent=1 // pred_fallthru
      _
    // Predicated region
    $region22: #{tpu_custom_call.1} parent=1 // pred_check
      _
    $region23: #{tpu_custom_call.1} parent=1 // pred_check_branch
      %45 = sbr.rel (0) target = $region25
    $region24: #{tpu_custom_call.1} parent=1 // pred_region
      %46 = dma.done [#allocation8], 2048
    $region25: #{tpu_custom_call.1} parent=1 // pred_fallthru
      _
    %p47 = scmp.eq.s32.totalorder 0, 0
    // Predicated region
    $region26: #{tpu_custom_call.1} parent=1 // pred_check
      %p48 = pneg %p47
    $region27: #{tpu_custom_call.1} parent=1 // pred_check_branch
      %50 = sbr.rel (%p48) target = $region29
    $region28: #{tpu_custom_call.1} parent=1 // pred_region
      %51 = vst [vmem:[#allocation2] sm:$0xff] 0.0
      %52 = vst [vmem:[#allocation2 + $0x8] sm:$0xff] 0.0
    $region29: #{tpu_custom_call.1} parent=1 // pred_fallthru
      _
    %v53 = vld [vmem:[#allocation2] sm:$0xff]
    %v54 = vld [vmem:[#allocation2 + $0x8] sm:$0xff]
    %v55 = vld [vmem:[#allocation4] sm:$0xff]
    %v56 = vld [vmem:[#allocation4 + $0x8] sm:$0xff]
    %v57 = vld [vmem:[#allocation7] sm:$0xff]
    %v58 = vld [vmem:[#allocation7 + $0x8] sm:$0xff]
    %v59 = vld [vmem:[#allocation7 + $0x10] sm:$0xff]
    %v60 = vld [vmem:[#allocation7 + $0x18] sm:$0xff]
    %v61 = vld [vmem:[#allocation7 + $0x20] sm:$0xff]
    %v62 = vld [vmem:[#allocation7 + $0x28] sm:$0xff]
    %v63 = vld [vmem:[#allocation7 + $0x30] sm:$0xff]
    %v64 = vld [vmem:[#allocation7 + $0x38] sm:$0xff]
    %v65 = vld [vmem:[#allocation7 + $0x40] sm:$0xff]
    %v66 = vld [vmem:[#allocation7 + $0x48] sm:$0xff]
    %v67 = vld [vmem:[#allocation7 + $0x50] sm:$0xff]
    %v68 = vld [vmem:[#allocation7 + $0x58] sm:$0xff]
    %v69 = vld [vmem:[#allocation7 + $0x60] sm:$0xff]
    %v70 = vld [vmem:[#allocation7 + $0x68] sm:$0xff]
    %v71 = vld [vmem:[#allocation7 + $0x70] sm:$0xff]
    %v72 = vld [vmem:[#allocation7 + $0x78] sm:$0xff]
    %73 = vmatprep.subr.mxu0 0.0
    %74 = vmatpush1.msra.mxu0 %v57
    %75 = vmatprep.subr.mxu0 0.0
    %76 = vmatpush1.msra.mxu0 %v58
    %77 = vmatprep.subr.mxu0 0.0
    %78 = vmatpush1.msra.mxu0 %v59
    %79 = vmatprep.subr.mxu0 0.0
    %80 = vmatpush1.msra.mxu0 %v60
    %81 = vmatprep.subr.mxu0 0.0
    %82 = vmatpush1.msra.mxu0 %v61
    %83 = vmatprep.subr.mxu0 0.0
    %84 = vmatpush1.msra.mxu0 %v62
    %85 = vmatprep.subr.mxu0 0.0
    %86 = vmatpush1.msra.mxu0 %v63
    %87 = vmatprep.subr.mxu0 0.0
    %88 = vmatpush1.msra.mxu0 %v64
    %89 = vmatprep.subr.mxu0 0.0
    %90 = vmatpush1.msra.mxu0 %v65
    %91 = vmatprep.subr.mxu0 0.0
    %92 = vmatpush1.msra.mxu0 %v66
    %93 = vmatprep.subr.mxu0 0.0
    %94 = vmatpush1.msra.mxu0 %v67
    %95 = vmatprep.subr.mxu0 0.0
    %96 = vmatpush1.msra.mxu0 %v68
    %97 = vmatprep.subr.mxu0 0.0
    %98 = vmatpush1.msra.mxu0 %v69
    %99 = vmatprep.subr.mxu0 0.0
    %100 = vmatpush1.msra.mxu0 %v70
    %101 = vmatprep.subr.mxu0 0.0
    %102 = vmatpush1.msra.mxu0 %v71
    %103 = vmatprep.subr.mxu0 0.0
    %104 = vmatpush1.msra.mxu0 %v72
    %105 = vmatprep.subr.mxu0 0.0
    %106 = vmatpush1.msra.mxu0 0.0
    %107 = vmatprep.subr.mxu0 0.0
    %108 = vmatpush1.msra.mxu0 0.0
    %109 = vmatprep.subr.mxu0 0.0
    %110 = vmatpush1.msra.mxu0 0.0
    %111 = vmatprep.subr.mxu0 0.0
    %112 = vmatpush1.msra.mxu0 0.0
    %113 = vmatprep.subr.mxu0 0.0
    %114 = vmatpush1.msra.mxu0 0.0
    %115 = vmatprep.subr.mxu0 0.0
    %116 = vmatpush1.msra.mxu0 0.0
    %117 = vmatprep.subr.mxu0 0.0
    %118 = vmatpush1.msra.mxu0 0.0
    %119 = vmatprep.subr.mxu0 0.0
    %120 = vmatpush1.msra.mxu0 0.0
    %121 = vmatprep.subr.mxu0 0.0
    %122 = vmatpush1.msra.mxu0 0.0
    %123 = vmatprep.subr.mxu0 0.0
    %124 = vmatpush1.msra.mxu0 0.0
    %125 = vmatprep.subr.mxu0 0.0
    %126 = vmatpush1.msra.mxu0 0.0
    %127 = vmatprep.subr.mxu0 0.0
    %128 = vmatpush1.msra.mxu0 0.0
    %129 = vmatprep.subr.mxu0 0.0
    %130 = vmatpush1.msra.mxu0 0.0
    %131 = vmatprep.subr.mxu0 0.0
    %132 = vmatpush1.msra.mxu0 0.0
    %133 = vmatprep.subr.mxu0 0.0
    %134 = vmatpush1.msra.mxu0 0.0
    %135 = vmatprep.subr.mxu0 0.0
    %136 = vmatpush1.msra.mxu0 0.0
    %137 = vmatprep.mubr.f32.mxu0 0.0
    %138 = vmatmul.mubr.f32.gmra.mrb[0].mxu0 %v55
    %v139 = vpop.f32.mrb[0].mxu0
    %v140 = vadd.f32 0.0, %v139
    %v141 = vpop.f32.mrb[0].mxu0
    %142 = vmatprep.mubr.f32.mxu0 0.0
    %143 = vmatmul.mubr.f32.gmra.mrb[0].mxu0 %v56
    %v144 = vpop.f32.mrb[0].mxu0
    %v145 = vadd.f32 0.0, %v144
    %v146 = vpop.f32.mrb[0].mxu0
    %147 = vdwg.mxu0
    %v148 = vadd.f32 %v53, %v140
    %v149 = vadd.f32 %v54, %v145
    %150 = vst [vmem:[#allocation2] sm:$0xff] %v148
    %151 = vst [vmem:[#allocation2 + $0x8] sm:$0xff] %v149
    // Predicated region
    $region30: #{tpu_custom_call.1} parent=1 // pred_check
      %p152 = pneg %p47
    $region31: #{tpu_custom_call.1} parent=1 // pred_check_branch
      %154 = sbr.rel (%p152) target = $region33
    $region32: #{tpu_custom_call.1} parent=1 // pred_region
      %v155 = vld [vmem:[#allocation2] sm:$0xff]
      %v156 = vld [vmem:[#allocation2 + $0x8] sm:$0xff]
      %s157 = sld [smem:[#allocation3]]
      %v158 = vstv %s157
      %v159 = vmul.f32 %v155, %v158
      %v160 = vmul.f32 %v156, %v158
      %v161 = vld [vmem:[%s2] sm:$0x1]
      %v163 = vlaneseq
      %v164 = vshrl.u32 %v163, 7
      %v165 = vsub.s32 0, %v164
      %v166 = vrot.slane %v161, %v165
      %v168 = vadd.f32 %v159, %v166
      %v169 = vadd.f32 %v160, %v166
      %170 = vst [vmem:[#allocation9] sm:$0xff] %v168
      %171 = vst [vmem:[#allocation9 + $0x8] sm:$0xff] %v169
    $region33: #{tpu_custom_call.1} parent=1 // pred_fallthru
      _
    // Predicated region
    $region34: #{tpu_custom_call.1} parent=1 // pred_check
      _
    $region35: #{tpu_custom_call.1} parent=1 // pred_check_branch
      %173 = sbr.rel (0) target = $region37
    $region36: #{tpu_custom_call.1} parent=1 // pred_region
      %s175 = ssub.s32 256, 256
      %176 = vsyncadd [#allocation6], %s175
      %s177 = sshll.u32 [#allocation9], 4
      %s178 = int_to_ptr.vmem [resolvable:$true] %s177
      %183 = dma.vmem_to_hbm [thread:$0]  %s178, 256, %s4, [#allocation6], 128, 128, 8
    $region37: #{tpu_custom_call.1} parent=1 // pred_fallthru
      _
    // Predicated region
    $region38: #{tpu_custom_call.1} parent=1 // pred_check
      _
    $region39: #{tpu_custom_call.1} parent=1 // pred_check_branch
      %185 = sbr.rel (0) target = $region41
    $region40: #{tpu_custom_call.1} parent=1 // pred_region
      %186 = dma.done [#allocation6], 256
    $region41: #{tpu_custom_call.1} parent=1 // pred_fallthru
      _
    %187 = vsyncpa [#allocation5], 1
    %188 = vsyncpa [#allocation8], 1
    %189 = vsyncpa [#allocation6], 1

</llo_original>
